<compile_context>
chip_gen: v6e
topology: v6e:2x2x1
jax: 0.10.0
libtpu: 0.0.40
codegen_flags: <defaults>
</compile_context>

<pallas_src>
import functools

import jax
import jax.numpy as jnp
from jax import lax
from jax.experimental import pallas as pl
from jax.experimental.pallas import tpu as pltpu

# ----------------------------------------------------------------------------
# Compiler params (small shim for older jax versions)
# ----------------------------------------------------------------------------
_CompilerParams = getattr(pltpu, "CompilerParams", None)
if _CompilerParams is None:  # pragma: no cover - older jax releases
    _CompilerParams = getattr(pltpu, "TPUCompilerParams")


def _round_up(n, m):
    return ((n + m - 1) // m) * m


def _cdiv(a, b):
    return -(-a // b)


def _get_int_attr(obj, names):
    for name in names:
        v = getattr(obj, name, None)
        if v is None:
            continue
        try:
            v = int(v)
        except Exception:
            continue
        if v > 0:
            return v
    return None


def _tpu_caps():
    """Return (vmem_capacity_bytes, tensorcores_per_chip), defensively."""
    vmem = None
    cores = None
    try:
        info = pltpu.get_tpu_info()
        vmem = _get_int_attr(
            info, ("vmem_capacity_bytes", "vmem_bytes", "vmem_size_bytes"))
        cores = _get_int_attr(
            info, ("num_cores", "tensorcores_per_chip", "num_tensorcores",
                   "cores_per_chip"))
        if cores is not None and cores > 8:   # implausible -> ignore
            cores = None
    except Exception:
        pass
    kind = ""
    try:
        kind = jax.devices()[0].device_kind.lower()
    except Exception:
        pass
    if vmem is None:
        small_vmem = ("v7" in kind) or ("7x" in kind)
        vmem = (64 if small_vmem else 128) * 1024 * 1024
    if cores is None:
        multi = any(s in kind for s in ("v7", "7x", "v4", "v5p"))
        cores = 2 if multi else 1
    return vmem, cores


_VMEM_CAP, _NUM_CORES = _tpu_caps()
# Leave headroom under physical capacity: ~44 MiB on 64-MiB parts (v7x),
# ~89 MiB on 128-MiB parts (v5e/v6e). Never below the old safe 32 MiB.
VMEM_LIMIT_BYTES = max(32 * 1024 * 1024,
                       min(int(_VMEM_CAP * 0.7), 96 * 1024 * 1024))
_CONV_MAX_TILE = 2048
_FC_MAX_TILE = 1024 if _VMEM_CAP >= 100 * 1024 * 1024 else 512


def _compiler_params():
    return _CompilerParams(
        dimension_semantics=("parallel",),
        vmem_limit_bytes=VMEM_LIMIT_BYTES,
    )


def _pick_tile(n, align, max_tile, min_steps=1):
    """Pick (tile, padded_n): tile % align == 0, tile divides padded_n, and the
    grid has >= min_steps steps when n is large enough to split."""
    n_al = _round_up(n, align)
    steps = max(min_steps, _cdiv(n_al, max_tile))
    tile = min(max_tile, _round_up(_cdiv(n_al, steps), align))
    padded = _round_up(n, tile)
    return tile, padded


# ----------------------------------------------------------------------------
# Pallas kernels
# ----------------------------------------------------------------------------
def _conv_t_kernel(w_ref, p_ref, b_ref, o_ref):
    """out = relu(W @ P + b); W:(OC,K) bf16, P:(K,TILE) bf16, b:(OC,1) f32."""
    acc = jnp.dot(w_ref[...], p_ref[...], preferred_element_type=jnp.float32)
    acc = jnp.maximum(acc + b_ref[...], 0.0)
    o_ref[...] = acc.astype(o_ref.dtype)


def _fc_fused_kernel(x_ref, w1_ref, b1_ref, w2_ref, b2_ref, o_ref):
    """out = relu(x @ W1 + b1) @ W2 + b2, hidden stays in VMEM/vregs."""
    h = jnp.dot(x_ref[...], w1_ref[...], preferred_element_type=jnp.float32)
    h = jnp.maximum(h + b1_ref[...], 0.0)
    out = jnp.dot(h.astype(jnp.bfloat16), w2_ref[...],
                  preferred_element_type=jnp.float32)
    o_ref[...] = (out + b2_ref[...]).astype(o_ref.dtype)


# ----------------------------------------------------------------------------
# Wrappers
# ----------------------------------------------------------------------------
def _im2col_t(y, k, s):
    """y: (C, B, H, W) -> transposed patches (C*k*k, B*OH*OW) (fused under jit).
    Runs in y's dtype (bf16) so the patch HBM traffic is half of f32."""
    C, B, H, W = y.shape
    OH = (H - k) // s + 1
    OW = (W - k) // s + 1
    idx_h = (jnp.arange(OH) * s)[:, None] + jnp.arange(k)[None, :]   # (OH, k)
    idx_w = (jnp.arange(OW) * s)[:, None] + jnp.arange(k)[None, :]   # (OW, k)
    y1 = y[:, :, idx_h, :]                 # (C, B, OH, k, W)
    y2 = y1[:, :, :, :, idx_w]             # (C, B, OH, k, OW, k)
    # -> (c, kh, kw, b, oh, ow): feature order matches torch OIHW weight reshape
    p = y2.transpose(0, 3, 5, 1, 2, 4).reshape(C * k * k, B * OH * OW)
    return p, OH, OW


def conv2d_relu_t(y, w_r, b_col, ksize, stride):
    """y: (C,B,H,W) bf16; w_r: (OC, C*k*k) bf16; b_col: (OC,1) f32.
    Valid conv + ReLU. Returns (OC, B, OH, OW) bf16 (channel-major)."""
    C, B, H, W = y.shape
    OC = w_r.shape[0]
    p, OH, OW = _im2col_t(y, ksize, stride)
    p = p.astype(jnp.bfloat16)                       # no-op when y is bf16
    K, M = p.shape
    # Lane-dense output tiles; >=2 parallel steps on multi-TensorCore chips.
    tile, m_pad = _pick_tile(M, 128, _CONV_MAX_TILE, _NUM_CORES)
    if m_pad != M:
        p = jnp.pad(p, ((0, 0), (0, m_pad - M)))
    out = pl.pallas_call(
        _conv_t_kernel,
        out_shape=jax.ShapeDtypeStruct((OC, m_pad), jnp.bfloat16),
        grid=(m_pad // tile,),
        in_specs=[
            pl.BlockSpec((OC, K), lambda i: (0, 0)),
            pl.BlockSpec((K, tile), lambda i: (0, i)),
            pl.BlockSpec((OC, 1), lambda i: (0, 0)),
        ],
        out_specs=pl.BlockSpec((OC, tile), lambda i: (0, i)),
        compiler_params=_compiler_params(),
    )(w_r, p, b_col)
    # Pad columns hold relu(bias) garbage -> slice them off before reshaping.
    return out[:, :M].reshape(OC, B, OH, OW)


def fc_fused(x, w1, b1, w2, b2):
    """x: (M,K); w1: (K,H) bf16; b1: (1,H) f32; w2: (H,Npad) bf16; b2: (1,Npad).
    Returns (M, Npad) f32 (caller slices the valid logit columns)."""
    M, K = x.shape
    H = w1.shape[1]
    N = w2.shape[1]
    xb = x.astype(jnp.bfloat16)
    tile, m_pad = _pick_tile(M, 16, _FC_MAX_TILE, _NUM_CORES)
    if m_pad != M:
        xb = jnp.pad(xb, ((0, m_pad - M), (0, 0)))
    out = pl.pallas_call(
        _fc_fused_kernel,
        out_shape=jax.ShapeDtypeStruct((m_pad, N), jnp.float32),
        grid=(m_pad // tile,),
        in_specs=[
            pl.BlockSpec((tile, K), lambda i: (i, 0)),
            pl.BlockSpec((K, H), lambda i: (0, 0)),
            pl.BlockSpec((1, H), lambda i: (0, 0)),
            pl.BlockSpec((H, N), lambda i: (0, 0)),
            pl.BlockSpec((1, N), lambda i: (0, 0)),
        ],
        out_specs=pl.BlockSpec((tile, N), lambda i: (i, 0)),
        compiler_params=_compiler_params(),
    )(xb, w1, b1, w2, b2)
    return out[:M]


# ----------------------------------------------------------------------------
# jitted forward passes (params passed as a pytree of pre-layouted arrays)
# ----------------------------------------------------------------------------
@functools.partial(jax.jit, static_argnums=(2,))
def _forward_pong(cp, x, n_actions):
    # bf16 cast BEFORE the transpose / im2col -> half the HBM plumbing traffic.
    y = x.astype(jnp.bfloat16).transpose(1, 0, 2, 3)              # (C,B,H,W)
    y = conv2d_relu_t(y, cp["conv1_w"], cp["conv1_b"], 8, 4)
    y = conv2d_relu_t(y, cp["conv2_w"], cp["conv2_b"], 4, 2)
    y = conv2d_relu_t(y, cp["conv3_w"], cp["conv3_b"], 3, 1)
    B = y.shape[1]
    flat = y.transpose(1, 0, 2, 3).reshape(B, -1)   # NCHW flatten == torch
    out = fc_fused(flat, cp["fc1_w"], cp["fc1_b"], cp["fc2_w"], cp["fc2_b"])
    return out[:, :n_actions]                        # drop lane-pad columns


@functools.partial(jax.jit, static_argnums=(2,))
def _forward_cartpole(cp, x, n_actions):
    out = fc_fused(x, cp["fc1_w"], cp["fc1_b"], cp["fc2_w"], cp["fc2_b"])
    return out[:, :n_actions]


# ----------------------------------------------------------------------------
# DQN (forward pass only), parameters initialized deterministically in-script
# ----------------------------------------------------------------------------
def _uniform(key, shape, bound):
    return jax.random.uniform(key, shape, jnp.float32, -bound, bound)


def _conv_init(kw, kb, oc, ic, k):
    bound = 1.0 / float(jnp.sqrt(ic * k * k))
    return (_uniform(kw, (oc, ic, k, k), bound), _uniform(kb, (oc,), bound))


def _fc_init(kw, kb, out_f, in_f):
    bound = 1.0 / float(jnp.sqrt(in_f))
    return (_uniform(kw, (out_f, in_f), bound), _uniform(kb, (out_f,), bound))


class PallasDQN:
    def __init__(self, env_config, key):
        self.env_name = env_config["name"]
        self.n_actions = env_config["n_actions"]
        ks = jax.random.split(key, 10)
        p = {}
        if self.env_name == "Pong-v0":
            p["conv1"] = _conv_init(ks[0], ks[1], 32, 4, 8)
            p["conv2"] = _conv_init(ks[2], ks[3], 64, 32, 4)
            p["conv3"] = _conv_init(ks[4], ks[5], 64, 64, 3)
            p["fc1"] = _fc_init(ks[6], ks[7], 512, 3136)
            p["fc2"] = _fc_init(ks[8], ks[9], self.n_actions, 512)
        elif self.env_name == "CartPole-v0":
            p["fc1"] = _fc_init(ks[0], ks[1], 256, 4)
            p["fc2"] = _fc_init(ks[2], ks[3], self.n_actions, 256)
        else:
            raise ValueError(self.env_name)
        self.params = p                      # f32 master params (torch layouts)

        # Pre-materialized compute layouts: no per-call transposes / casts.
        cp = {}
        if self.env_name == "Pong-v0":
            for name in ("conv1", "conv2", "conv3"):
                w, b = p[name]
                oc = w.shape[0]
                cp[name + "_w"] = w.reshape(oc, -1).astype(jnp.bfloat16)
                cp[name + "_b"] = b.reshape(oc, 1).astype(jnp.float32)
        # fc1: (in, out) bf16 / (1, out) f32
        w1, b1 = p["fc1"]
        cp["fc1_w"] = w1.T.astype(jnp.bfloat16)
        cp["fc1_b"] = b1.reshape(1, -1).astype(jnp.float32)
        # fc2: zero-pad the output columns to 128 lanes -> lane-dense stores.
        w2, b2 = p["fc2"]
        n_pad = _round_up(self.n_actions, 128)
        cp["fc2_w"] = jnp.pad(w2.T.astype(jnp.bfloat16),
                              ((0, 0), (0, n_pad - self.n_actions)))
        cp["fc2_b"] = jnp.pad(b2, (0, n_pad - self.n_actions)
                              ).reshape(1, -1).astype(jnp.float32)
        self.cparams = cp

    def forward(self, x):
        if self.env_name == "Pong-v0":
            return _forward_pong(self.cparams, x, self.n_actions)
        return _forward_cartpole(self.cparams, x, self.n_actions)

    # Pure-JAX f32 reference (mirrors the torch forward) for correctness check.
    def forward_ref(self, x):
        p = self.params
        if self.env_name == "Pong-v0":
            dn = ("NCHW", "OIHW", "NCHW")
            for name, s in (("conv1", 4), ("conv2", 2), ("conv3", 1)):
                w, b = p[name]
                x = lax.conv_general_dilated(x, w, (s, s), "VALID",
                                             dimension_numbers=dn)
                x = jnp.maximum(x + b[None, :, None, None], 0.0)
            x = x.reshape(x.shape[0], -1)
            x = jnp.maximum(x @ p["fc1"][0].T + p["fc1"][1], 0.0)
            return x @ p["fc2"][0].T + p["fc2"][1]
        else:
            x = jnp.maximum(x @ p["fc1"][0].T + p["fc1"][1], 0.0)
            return x @ p["fc2"][0].T + p["fc2"][1]

    # TODO(synk): epsilon-greedy `act` (host RNG + python control flow) is not
    # ported; only the forward pass is implemented as Pallas kernels.


if __name__ == "__main__":
    root = jax.random.PRNGKey(0)
    k_cp_param, k_cp_x, k_pong_param, k_pong_x = jax.random.split(root, 4)

    # CartPole-v0: x (batch=2, obs=4), n_actions=2
    cp_cfg = {"name": "CartPole-v0", "n_actions": 2, "batch_size": 2,
              "gamma": 0.99, "eps_start": 1.0, "eps_end": 0.05,
              "anneal_length": 1000}
    cp_model = PallasDQN(cp_cfg, k_cp_param)
    x_cp = jax.random.normal(k_cp_x, (2, 4), jnp.float32)
    out_cp = jax.block_until_ready(cp_model.forward(x_cp))
    ref_cp = cp_model.forward_ref(x_cp)
    assert out_cp.shape == (2, 2)
    assert jnp.allclose(out_cp, ref_cp, rtol=2e-2, atol=1e-1), "CartPole mismatch"

    # Pong-v0: x (batch=2, 4, 84, 84) -- 84x84 implied by fc1 in_features=3136
    pong_cfg = {"name": "Pong-v0", "n_actions": 6, "batch_size": 2,
                "gamma": 0.99, "eps_start": 1.0, "eps_end": 0.05,
                "anneal_length": 1000}
    pong_model = PallasDQN(pong_cfg, k_pong_param)
    x_pong = jax.random.normal(k_pong_x, (2, 4, 84, 84), jnp.float32)
    out_pong = jax.block_until_ready(pong_model.forward(x_pong))
    ref_pong = pong_model.forward_ref(x_pong)
    assert out_pong.shape == (2, 6)
    assert jnp.allclose(out_pong, ref_pong, rtol=2e-2, atol=1e-1), "Pong mismatch"

    print("KERNEL_OK")
</pallas_src>

<mosaic_0001>
module attributes {stable_mosaic.version = 11 : i64} {
  func.func @_fc_fused_kernel(%arg0: i32, %arg1: memref<16x4xbf16, #tpu.memory_space<vmem>>, %arg2: memref<4x256xbf16, #tpu.memory_space<vmem>>, %arg3: memref<1x256xf32, #tpu.memory_space<vmem>>, %arg4: memref<256x128xbf16, #tpu.memory_space<vmem>>, %arg5: memref<1x128xf32, #tpu.memory_space<vmem>>, %arg6: memref<16x128xf32, #tpu.memory_space<vmem>>) attributes {dimension_semantics = [#tpu.dimension_semantics<parallel>], iteration_bounds = array<i64: 1>, scalar_prefetch = 0 : i64, scratch_operands = 0 : i64, tpu.core_type = #tpu.core_type<tc>, window_params = [{transform_indices = @transform_0, window_bounds = array<i64: 16, 4>}, {pipeline_mode = #tpu.pipeline_mode<synchronous>, transform_indices = @transform_1, window_bounds = array<i64: 4, 256>}, {pipeline_mode = #tpu.pipeline_mode<synchronous>, transform_indices = @transform_2, window_bounds = array<i64: 1, 256>}, {pipeline_mode = #tpu.pipeline_mode<synchronous>, transform_indices = @transform_3, window_bounds = array<i64: 256, 128>}, {pipeline_mode = #tpu.pipeline_mode<synchronous>, transform_indices = @transform_4, window_bounds = array<i64: 1, 128>}, {transform_indices = @transform_5, window_bounds = array<i64: 16, 128>}]} {
    %c0 = arith.constant 0 : index
    %c0_0 = arith.constant 0 : index
    %0 = vector.load %arg1[%c0, %c0_0] : memref<16x4xbf16, #tpu.memory_space<vmem>>, vector<16x4xbf16>
    %c0_1 = arith.constant 0 : index
    %c0_2 = arith.constant 0 : index
    %1 = vector.load %arg2[%c0_1, %c0_2] : memref<4x256xbf16, #tpu.memory_space<vmem>>, vector<4x256xbf16>
    %cst = arith.constant dense<0.000000e+00> : vector<16x256xf32>
    %2 = tpu.matmul %0, %1, %cst {dimension_numbers = #tpu.dot_dimension_numbers<[1], [0], [0], [1], [0, 0, 1, 1], [], []>} : vector<16x4xbf16>, vector<4x256xbf16>, vector<16x256xf32> -> vector<16x256xf32>
    %c0_3 = arith.constant 0 : index
    %c0_4 = arith.constant 0 : index
    %3 = vector.load %arg3[%c0_3, %c0_4] : memref<1x256xf32, #tpu.memory_space<vmem>>, vector<1x256xf32>
    %4 = vector.broadcast %3 : vector<1x256xf32> to vector<16x256xf32>
    %5 = arith.addf %2, %4 : vector<16x256xf32>
    %cst_5 = arith.constant 0.000000e+00 : f32
    %6 = vector.broadcast %cst_5 : f32 to vector<16x256xf32>
    %7 = arith.maximumf %5, %6 : vector<16x256xf32>
    %8 = arith.truncf %7 : vector<16x256xf32> to vector<16x256xbf16>
    %c0_6 = arith.constant 0 : index
    %c0_7 = arith.constant 0 : index
    %9 = vector.load %arg4[%c0_6, %c0_7] : memref<256x128xbf16, #tpu.memory_space<vmem>>, vector<256x128xbf16>
    %cst_8 = arith.constant dense<0.000000e+00> : vector<16x128xf32>
    %10 = tpu.matmul %8, %9, %cst_8 {dimension_numbers = #tpu.dot_dimension_numbers<[1], [0], [0], [1], [0, 0, 1, 1], [], []>} : vector<16x256xbf16>, vector<256x128xbf16>, vector<16x128xf32> -> vector<16x128xf32>
    %c0_9 = arith.constant 0 : index
    %c0_10 = arith.constant 0 : index
    %11 = vector.load %arg5[%c0_9, %c0_10] : memref<1x128xf32, #tpu.memory_space<vmem>>, vector<1x128xf32>
    %12 = vector.broadcast %11 : vector<1x128xf32> to vector<16x128xf32>
    %13 = arith.addf %10, %12 : vector<16x128xf32>
    %c0_11 = arith.constant 0 : index
    %c0_12 = arith.constant 0 : index
    %14 = vector.load %arg6[%c0_11, %c0_12] : memref<16x128xf32, #tpu.memory_space<vmem>>, vector<16x128xf32>
    tpu.vector_store %arg6[%c0_11, %c0_12], %13 {strides = array<i32>} : memref<16x128xf32, #tpu.memory_space<vmem>>, vector<16x128xf32>,
    return
  }
  func.func @transform_0(%arg0: i32) -> (i32, i32) {
    %c0_i32 = arith.constant 0 : i32
    %c0_i32_0 = arith.constant 0 : i32
    return %arg0, %c0_i32 : i32, i32
  }
  func.func @transform_1(%arg0: i32) -> (i32, i32) {
    %c0_i32 = arith.constant 0 : i32
    %c0_i32_0 = arith.constant 0 : i32
    %c0_i32_1 = arith.constant 0 : i32
    return %c0_i32, %c0_i32_0 : i32, i32
  }
  func.func @transform_2(%arg0: i32) -> (i32, i32) {
    %c0_i32 = arith.constant 0 : i32
    %c0_i32_0 = arith.constant 0 : i32
    %c0_i32_1 = arith.constant 0 : i32
    return %c0_i32, %c0_i32_0 : i32, i32
  }
  func.func @transform_3(%arg0: i32) -> (i32, i32) {
    %c0_i32 = arith.constant 0 : i32
    %c0_i32_0 = arith.constant 0 : i32
    %c0_i32_1 = arith.constant 0 : i32
    return %c0_i32, %c0_i32_0 : i32, i32
  }
  func.func @transform_4(%arg0: i32) -> (i32, i32) {
    %c0_i32 = arith.constant 0 : i32
    %c0_i32_0 = arith.constant 0 : i32
    %c0_i32_1 = arith.constant 0 : i32
    return %c0_i32, %c0_i32_0 : i32, i32
  }
  func.func @transform_5(%arg0: i32) -> (i32, i32) {
    %c0_i32 = arith.constant 0 : i32
    %c0_i32_0 = arith.constant 0 : i32
    return %arg0, %c0_i32 : i32, i32
  }
}

</mosaic_0001>

<llo_original>
// kernel: _forward_cartpole.1
$region0: #{_forward_cartpole.1}
  #allocation0 [shape = 'u32[]', space=smem, size = 0x4, offset = 0x4, fixed_abs, tag = 'smem constant byte address 0x4 - core index']
  #allocation1 [shape = 'u32[144,128]{1,0:T(1,128)}', space=vmem, size = 0x12000, scoped, tag = 'internal scratch']
  %s0 = inlined_call_operand.vmem [shape: bf16[16,4], index: 0, kind: input, shape index: {}]
  %s1 = inlined_call_operand.vmem [shape: bf16[4,256], index: 1, kind: input, shape index: {}]
  %s2 = inlined_call_operand.vmem [shape: f32[1,256], index: 2, kind: input, shape index: {}]
  %s3 = inlined_call_operand.hbm [shape: bf16[256,128], index: 3, kind: input, shape index: {}]
  %s4 = inlined_call_operand.vmem [shape: f32[1,128], index: 4, kind: input, shape index: {}]
  %s5 = inlined_call_operand.vmem [shape: f32[16,128], index: 5, kind: output, shape index: {}]
  %s6 = sld [smem:[#allocation0]]
  $region34: #{_forward_cartpole.1} parent=0
    _
  %s8 = ssub.s32 1, %s6
  %s9 = scalar_select 0, %s8, %s6
  $region1: #{_forward_cartpole.1} parent=0
    #allocation2 [shape = 'u8[65536]{0}', space=vmem, size = 0x10000, scoped, tag = 'input window, operand 3, single buffered']
    #allocation3 [shape = 's32[1]{0}', space=sflag, size = 0x4, scoped, tag = 'scoped memory for _forward_cartpole.1']
    %10 = vsyncpa [#allocation3], 0
    // Predicated region
    $region2: #{_forward_cartpole.1} parent=1 // pred_check
      _
    $region3: #{_forward_cartpole.1} parent=1 // pred_check_branch
      %12 = sbr.rel (0) target = $region5
    $region4: #{_forward_cartpole.1} parent=1 // pred_region
      _
    $region5: #{_forward_cartpole.1} parent=1 // pred_fallthru
      _
    // Predicated region
    $region6: #{_forward_cartpole.1} parent=1 // pred_check
      _
    $region7: #{_forward_cartpole.1} parent=1 // pred_check_branch
      %14 = sbr.rel (0) target = $region9
    $region8: #{_forward_cartpole.1} parent=1 // pred_region
      _
    $region9: #{_forward_cartpole.1} parent=1 // pred_fallthru
      _
    // Predicated region
    $region10: #{_forward_cartpole.1} parent=1 // pred_check
      _
    $region11: #{_forward_cartpole.1} parent=1 // pred_check_branch
      %16 = sbr.rel (0) target = $region13
    $region12: #{_forward_cartpole.1} parent=1 // pred_region
      _
    $region13: #{_forward_cartpole.1} parent=1 // pred_fallthru
      _
    // Predicated region
    $region14: #{_forward_cartpole.1} parent=1 // pred_check
      _
    $region15: #{_forward_cartpole.1} parent=1 // pred_check_branch
      %18 = sbr.rel (0) target = $region17
    $region16: #{_forward_cartpole.1} parent=1 // pred_region
      %s20 = ssub.s32 2048, 2048
      %21 = vsyncadd [#allocation3], %s20
      %s22 = sshll.u32 [#allocation2], 4
      %s23 = int_to_ptr.vmem [resolvable:$true] %s22
      %28 = dma.hbm_to_vmem [thread:$0]  %s3, 2048, %s23, [#allocation3], 64, 64, 4
    $region17: #{_forward_cartpole.1} parent=1 // pred_fallthru
      _
    // Predicated region
    $region18: #{_forward_cartpole.1} parent=1 // pred_check
      _
    $region19: #{_forward_cartpole.1} parent=1 // pred_check_branch
      %30 = sbr.rel (0) target = $region21
    $region20: #{_forward_cartpole.1} parent=1 // pred_region
      _
    $region21: #{_forward_cartpole.1} parent=1 // pred_fallthru
      _
    // Predicated region
    $region22: #{_forward_cartpole.1} parent=1 // pred_check
      _
    $region23: #{_forward_cartpole.1} parent=1 // pred_check_branch
      %32 = sbr.rel (0) target = $region25
    $region24: #{_forward_cartpole.1} parent=1 // pred_region
      %33 = dma.done [#allocation3], 2048
    $region25: #{_forward_cartpole.1} parent=1 // pred_fallthru
      _
    %v35 = vld [vmem:[%s0] sm:$0xf]
    %v36 = vld [vmem:[%s0 + $0x4] sm:$0xf]
    %v37 = vld [vmem:[%s1] sm:$0xf]
    %v38 = vld [vmem:[%s2] sm:$0x3]
    %v40 = vlaneseq
    %v41 = vshrl.u32 %v40, 7
    %v42 = vsub.s32 0, %v41
    %v43 = vrot.slane %v38, %v42
    %v44 = vlaneseq
    %v45 = vshrl.u32 %v44, 7
    %v46 = vsub.s32 1, %v45
    %v47 = vrot.slane %v38, %v46
    %v52 = vunpack.c.l.b16 %v35
    %v53 = vunpack.c.l.b16 %v36
    %v54 = vpack.c.b16 %v53, %v52
    %v57 = vunpack.c.l.s4 1983009808
    %v58 = vunpack.c.0.s8 %v57
    %v59 = vlaneseq
    %v60 = vshrl.u32 %v59, 7
    %v61 = vsub.s32 %v58, %v60
    %v62 = vrot.slane %v37, %v61
    %v63 = vcombine.high %v62, %v62
    %vm64 = vcmask 31744
    %v66 = vsel %vm64, %v54, 0
    %vm68 = vcmask 1041408
    %v70 = vsel %vm68, %v62, 0
    %v73 = vsel %vm68, %v63, 0
    %75 = vmatprep.subr.bf16.mxu0 0
    %76 = vmatpush1.bf16.msra.mxu0 0
    %77 = vmatprep.subr.bf16.mxu0 0
    %78 = vmatpush1.bf16.msra.mxu0 0
    %79 = vmatprep.subr.bf16.mxu0 0
    %80 = vmatpush1.bf16.msra.mxu0 0
    %81 = vmatprep.subr.bf16.mxu0 0
    %82 = vmatpush1.bf16.msra.mxu0 0
    %83 = vmatprep.subr.bf16.mxu0 0
    %84 = vmatpush1.bf16.msra.mxu0 0
    %85 = vmatprep.subr.bf16.mxu0 0
    %86 = vmatpush1.bf16.msra.mxu0 0
    %87 = vmatprep.subr.bf16.mxu0 0
    %88 = vmatpush1.bf16.msra.mxu0 0
    %89 = vmatprep.subr.bf16.mxu0 %v73
    %90 = vmatpush1.bf16.msra.mxu0 %v70
    %91 = vmatprep.subr.bf16.mxu0 0
    %92 = vmatpush2.bf16.msra.mxu0 0
    %93 = vmatprep.subr.bf16.mxu0 0
    %94 = vmatpush2.bf16.msra.mxu0 0
    %95 = vmatprep.subr.bf16.mxu0 0
    %96 = vmatpush2.bf16.msra.mxu0 0
    %97 = vmatprep.subr.bf16.mxu0 0
    %98 = vmatpush2.bf16.msra.mxu0 0
    %99 = vmatprep.subr.bf16.mxu0 0
    %100 = vmatpush2.bf16.msra.mxu0 0
    %101 = vmatprep.subr.bf16.mxu0 0
    %102 = vmatpush2.bf16.msra.mxu0 0
    %103 = vmatprep.subr.bf16.mxu0 0
    %104 = vmatpush2.bf16.msra.mxu0 0
    %105 = vmatprep.subr.bf16.mxu0 0
    %106 = vmatpush2.bf16.msra.mxu0 0
    %107 = vmatprep.mubr.bf16.mxu0 0
    %108 = vmatmul.mubr.bf16.gmra.mxu0 %v66
    %v109 = vpop.f32.mrf.mxu0
    %v110 = vadd.f32 %v43, %v109
    %v111 = vpop.f32.mrf.mxu0
    %v112 = vadd.f32 %v47, %v111
    %v113 = vpop.f32.mrf.mxu0
    %v114 = vadd.f32 %v43, %v113
    %v115 = vpop.f32.mrf.mxu0
    %v116 = vadd.f32 %v47, %v115
    %117 = vdwg.mxu0
    %v118 = vmax.f32 %v110, 0.0
    %v119 = vmax.f32 %v112, 0.0
    %v120 = vmax.f32 %v114, 0.0
    %v121 = vmax.f32 %v116, 0.0
    %v122 = vpack.c.bf16 %v120, %v118
    %v123 = vpack.c.bf16 %v121, %v119
    %v124 = vld [vmem:[#allocation2] sm:$0xf]
    %v125 = vld [vmem:[#allocation2 + $0x4] sm:$0xf]
    %v126 = vld [vmem:[#allocation2 + $0x8] sm:$0xf]
    %v127 = vld [vmem:[#allocation2 + $0xc] sm:$0xf]
    %v128 = vld [vmem:[#allocation2 + $0x10] sm:$0xf]
    %v129 = vld [vmem:[#allocation2 + $0x14] sm:$0xf]
    %v130 = vld [vmem:[#allocation2 + $0x18] sm:$0xf]
    %v131 = vld [vmem:[#allocation2 + $0x1c] sm:$0xf]
    %v132 = vld [vmem:[#allocation2 + $0x20] sm:$0xf]
    %v133 = vld [vmem:[#allocation2 + $0x24] sm:$0xf]
    %v134 = vld [vmem:[#allocation2 + $0x28] sm:$0xf]
    %v135 = vld [vmem:[#allocation2 + $0x2c] sm:$0xf]
    %v136 = vld [vmem:[#allocation2 + $0x30] sm:$0xf]
    %v137 = vld [vmem:[#allocation2 + $0x34] sm:$0xf]
    %v138 = vld [vmem:[#allocation2 + $0x38] sm:$0xf]
    %v139 = vld [vmem:[#allocation2 + $0x3c] sm:$0xf]
    %v140 = vld [vmem:[#allocation2 + $0x40] sm:$0xf]
    %v141 = vld [vmem:[#allocation2 + $0x44] sm:$0xf]
    %v142 = vld [vmem:[#allocation2 + $0x48] sm:$0xf]
    %v143 = vld [vmem:[#allocation2 + $0x4c] sm:$0xf]
    %v144 = vld [vmem:[#allocation2 + $0x50] sm:$0xf]
    %v145 = vld [vmem:[#allocation2 + $0x54] sm:$0xf]
    %v146 = vld [vmem:[#allocation2 + $0x58] sm:$0xf]
    %v147 = vld [vmem:[#allocation2 + $0x5c] sm:$0xf]
    %v148 = vld [vmem:[#allocation2 + $0x60] sm:$0xf]
    %v149 = vld [vmem:[#allocation2 + $0x64] sm:$0xf]
    %v150 = vld [vmem:[#allocation2 + $0x68] sm:$0xf]
    %v151 = vld [vmem:[#allocation2 + $0x6c] sm:$0xf]
    %v152 = vld [vmem:[#allocation2 + $0x70] sm:$0xf]
    %v153 = vld [vmem:[#allocation2 + $0x74] sm:$0xf]
    %v154 = vld [vmem:[#allocation2 + $0x78] sm:$0xf]
    %v155 = vld [vmem:[#allocation2 + $0x7c] sm:$0xf]
    %v156 = vld [vmem:[%s4] sm:$0x1]
    %v158 = vlaneseq
    %v159 = vshrl.u32 %v158, 7
    %v160 = vsub.s32 0, %v159
    %v161 = vrot.slane %v156, %v160
    %v195 = vunpack.c.l.b16 %v124
    %v196 = vunpack.c.l.b16 %v125
    %v197 = vunpack.c.l.b16 %v126
    %v198 = vunpack.c.l.b16 %v127
    %v199 = vunpack.c.l.b16 %v128
    %v200 = vunpack.c.l.b16 %v129
    %v201 = vunpack.c.l.b16 %v130
    %v202 = vunpack.c.l.b16 %v131
    %v203 = vunpack.c.l.b16 %v132
    %v204 = vunpack.c.l.b16 %v133
    %v205 = vunpack.c.l.b16 %v134
    %v206 = vunpack.c.l.b16 %v135
    %v207 = vunpack.c.l.b16 %v136
    %v208 = vunpack.c.l.b16 %v137
    %v209 = vunpack.c.l.b16 %v138
    %v210 = vunpack.c.l.b16 %v139
    %v211 = vunpack.c.l.b16 %v140
    %v212 = vunpack.c.l.b16 %v141
    %v213 = vunpack.c.l.b16 %v142
    %v214 = vunpack.c.l.b16 %v143
    %v215 = vunpack.c.l.b16 %v144
    %v216 = vunpack.c.l.b16 %v145
    %v217 = vunpack.c.l.b16 %v146
    %v218 = vunpack.c.l.b16 %v147
    %v219 = vunpack.c.l.b16 %v148
    %v220 = vunpack.c.l.b16 %v149
    %v221 = vunpack.c.l.b16 %v150
    %v222 = vunpack.c.l.b16 %v151
    %v223 = vunpack.c.l.b16 %v152
    %v224 = vunpack.c.l.b16 %v153
    %v225 = vunpack.c.l.b16 %v154
    %v226 = vunpack.c.l.b16 %v155
    %v227 = vpack.c.b16 %v196, %v195
    %v228 = vpack.c.b16 %v198, %v197
    %v229 = vpack.c.b16 %v200, %v199
    %v230 = vpack.c.b16 %v202, %v201
    %v231 = vpack.c.b16 %v204, %v203
    %v232 = vpack.c.b16 %v206, %v205
    %v233 = vpack.c.b16 %v208, %v207
    %v234 = vpack.c.b16 %v210, %v209
    %v235 = vpack.c.b16 %v212, %v211
    %v236 = vpack.c.b16 %v214, %v213
    %v237 = vpack.c.b16 %v216, %v215
    %v238 = vpack.c.b16 %v218, %v217
    %v239 = vpack.c.b16 %v220, %v219
    %v240 = vpack.c.b16 %v222, %v221
    %v241 = vpack.c.b16 %v224, %v223
    %v242 = vpack.c.b16 %v226, %v225
    %259 = vmatprep.subr.bf16.mxu0 0
    %260 = vmatpush1.bf16.msra.mxu0 %v234
    %261 = vmatprep.subr.bf16.mxu0 0
    %262 = vmatpush1.bf16.msra.mxu0 %v233
    %263 = vmatprep.subr.bf16.mxu0 0
    %264 = vmatpush1.bf16.msra.mxu0 %v232
    %265 = vmatprep.subr.bf16.mxu0 0
    %266 = vmatpush1.bf16.msra.mxu0 %v231
    %267 = vmatprep.subr.bf16.mxu0 0
    %268 = vmatpush1.bf16.msra.mxu0 %v230
    %269 = vmatprep.subr.bf16.mxu0 0
    %270 = vmatpush1.bf16.msra.mxu0 %v229
    %271 = vmatprep.subr.bf16.mxu0 0
    %272 = vmatpush1.bf16.msra.mxu0 %v228
    %273 = vmatprep.subr.bf16.mxu0 0
    %274 = vmatpush1.bf16.msra.mxu0 %v227
    %275 = vmatprep.subr.bf16.mxu0 0
    %276 = vmatpush2.bf16.msra.mxu0 %v242
    %277 = vmatprep.subr.bf16.mxu0 0
    %278 = vmatpush2.bf16.msra.mxu0 %v241
    %279 = vmatprep.subr.bf16.mxu0 0
    %280 = vmatpush2.bf16.msra.mxu0 %v240
    %281 = vmatprep.subr.bf16.mxu0 0
    %282 = vmatpush2.bf16.msra.mxu0 %v239
    %283 = vmatprep.subr.bf16.mxu0 0
    %284 = vmatpush2.bf16.msra.mxu0 %v238
    %285 = vmatprep.subr.bf16.mxu0 0
    %286 = vmatpush2.bf16.msra.mxu0 %v237
    %287 = vmatprep.subr.bf16.mxu0 0
    %288 = vmatpush2.bf16.msra.mxu0 %v236
    %289 = vmatprep.subr.bf16.mxu0 0
    %290 = vmatpush2.bf16.msra.mxu0 %v235
    %291 = vmatprep.mubr.bf16.mxu0 %v123
    %292 = vmatmul.mubr.bf16.gmra.mxu0 %v122
    %v293 = vpop.f32.mrf.mxu0
    %v294 = vadd.f32 %v161, %v293
    %v295 = vpop.f32.mrf.mxu0
    %v296 = vpop.f32.mrf.mxu0
    %v297 = vadd.f32 %v161, %v296
    %v298 = vpop.f32.mrf.mxu0
    %299 = vdwg.mxu0
    %300 = vst [vmem:[%s5] sm:$0xff] %v294
    %301 = vst [vmem:[%s5 + $0x8] sm:$0xff] %v297
    // Predicated region
    $region26: #{_forward_cartpole.1} parent=1 // pred_check
      _
    $region27: #{_forward_cartpole.1} parent=1 // pred_check_branch
      %303 = sbr.rel (0) target = $region29
    $region28: #{_forward_cartpole.1} parent=1 // pred_region
      _
    $region29: #{_forward_cartpole.1} parent=1 // pred_fallthru
      _
    // Predicated region
    $region30: #{_forward_cartpole.1} parent=1 // pred_check
      _
    $region31: #{_forward_cartpole.1} parent=1 // pred_check_branch
      %305 = sbr.rel (0) target = $region33
    $region32: #{_forward_cartpole.1} parent=1 // pred_region
      _
    $region33: #{_forward_cartpole.1} parent=1 // pred_fallthru
      _
    %306 = vsyncpa [#allocation3], 1

</llo_original>
